<compile_context>
chip_gen: v5e
topology: v5e:2x2
jax: 0.10.0
libtpu: 0.0.40
codegen_flags: <defaults>
</compile_context>

<pallas_src>
import jax
import jax.numpy as jnp
from jax.experimental import pallas as pl
from jax.experimental.pallas import tpu as pltpu


def _round_up(v, m):
    return ((v + m - 1) // m) * m


# -----------------------------------------------------------------------------
# Path 1: degenerate 1 -> 1 linear regression (the module's shape).
# Pure VPU multiply-add, merged scalar params in SMEM, 128-lane-dense output.
# -----------------------------------------------------------------------------
def _linear_scalar_kernel(x_ref, p_ref, o_ref):
    w = p_ref[0, 0]                      # scalar reads from SMEM (scalar path)
    b = p_ref[0, 1]
    # x_ref / o_ref are [1, padded_batch]: batch maps to lanes -> unmasked vst.
    o_ref[...] = x_ref[...] * w + b


def _linear_forward_1x1(x, w, b):
    batch = x.shape[0]
    padded = _round_up(batch, 128)       # 128-lane-dense block, no vst.msk
    x_lane = x.reshape(1, batch)
    if padded != batch:
        x_lane = jnp.pad(x_lane, ((0, 0), (0, padded - batch)))
    # Single (1, 2) SMEM operand holding [w, b] -> one operand descriptor.
    params = jnp.concatenate([w.reshape(1, 1), b.reshape(1, 1)], axis=1)

    out = pl.pallas_call(
        _linear_scalar_kernel,
        out_shape=jax.ShapeDtypeStruct((1, padded), x.dtype),
        in_specs=[
            pl.BlockSpec(memory_space=pltpu.MemorySpace.VMEM),   # whole array
            pl.BlockSpec(memory_space=pltpu.MemorySpace.SMEM),   # [w, b]
        ],
        out_specs=pl.BlockSpec(memory_space=pltpu.MemorySpace.VMEM),
        cost_estimate=pl.CostEstimate(
            flops=2 * padded,
            transcendentals=0,
            bytes_accessed=4 * (2 * padded + 2),
        ),
    )(x_lane, params)
    # TODO(synk): if this sits on a hot path, keep the (1, N)-lane layout
    # end-to-end (or fuse into an adjacent kernel) so these reshapes vanish.
    return out[:, :batch].reshape(batch, 1)


# -----------------------------------------------------------------------------
# Path 2: general tiled matmul (in_features > 1 or out_features > 1).
# M/N parallel, K arbitrary (last); f32 output block IS the accumulator.
# -----------------------------------------------------------------------------
def _linear_matmul_kernel(x_ref, wt_ref, b_ref, o_ref):
    k = pl.program_id(2)

    @pl.when(k == 0)
    def _():
        # Fold the bias into the accumulator init (output block is resident
        # across the k axis since its index_map is (i, j)).
        o_ref[...] = jnp.broadcast_to(b_ref[...], o_ref.shape).astype(o_ref.dtype)

    # W is pre-transposed to [K, N] in the wrapper: contract x[tm, tk] with
    # wt[tk, tn] directly -> no per-step transpose in the vector-extended slot.
    o_ref[...] += jax.lax.dot_general(
        x_ref[...], wt_ref[...],
        dimension_numbers=(((1,), (0,)), ((), ())),
        preferred_element_type=jnp.float32,
    )


def _linear_forward_general(x, w, b, *, tm=256, tn=256, tk=512):
    batch, in_dim = x.shape
    out_dim = w.shape[0]
    # Output block doubles as the f32 accumulator (nn.Linear default dtype).
    assert x.dtype == jnp.float32, "general path accumulates in the f32 output"

    # Clamp tiles to the (rounded-up) problem dims; keep (8, 128) legality.
    tm = min(tm, _round_up(batch, 8))
    tn = min(tn, _round_up(out_dim, 128))
    tk = min(tk, _round_up(in_dim, 128))

    # Only the reduction axis K needs zero padding for correctness; ragged
    # M / N are handled by cdiv grids + boundary-masked loads/stores.
    kp = _round_up(in_dim, tk)
    wt = w.T                              # one-time [out, in] -> [in, out]
    if kp != in_dim:
        x = jnp.pad(x, ((0, 0), (0, kp - in_dim)))
        wt = jnp.pad(wt, ((0, kp - in_dim), (0, 0)))
    b2 = b.reshape(1, out_dim).astype(jnp.float32)

    gm = pl.cdiv(batch, tm)
    gn = pl.cdiv(out_dim, tn)
    gk = kp // tk

    out = pl.pallas_call(
        _linear_matmul_kernel,
        out_shape=jax.ShapeDtypeStruct((batch, out_dim), x.dtype),
        grid_spec=pltpu.PrefetchScalarGridSpec(
            num_scalar_prefetch=0,
            grid=(gm, gn, gk),
            in_specs=[
                pl.BlockSpec((tm, tk), lambda i, j, k: (i, k)),   # x
                pl.BlockSpec((tk, tn), lambda i, j, k: (k, j)),   # W^T
                pl.BlockSpec((1, tn), lambda i, j, k: (0, j)),    # bias
            ],
            out_specs=pl.BlockSpec((tm, tn), lambda i, j, k: (i, j)),
        ),
        compiler_params=pltpu.CompilerParams(
            dimension_semantics=("parallel", "parallel", "arbitrary"),
        ),
        cost_estimate=pl.CostEstimate(
            flops=2 * batch * out_dim * kp,
            transcendentals=0,
            # Account for x re-read gn times and W re-read gm times.
            bytes_accessed=4 * (batch * kp * gn + kp * out_dim * gm
                                + batch * out_dim + out_dim * gm * gn),
        ),
    )(x, wt, b2)
    return out


# -----------------------------------------------------------------------------
# Public wrapper: equivalent to torch.nn.Linear(x) -> x @ W^T + b.
# -----------------------------------------------------------------------------
@jax.jit
def linear_forward(x, w, b):
    _, in_dim = x.shape
    out_dim = w.shape[0]
    if in_dim == 1 and out_dim == 1:
        return _linear_forward_1x1(x, w, b)
    return _linear_forward_general(x, w, b)


if __name__ == "__main__":
    n = 50          # matches `n = 50` in the reference script
    input_dim = 1   # nn.Linear(input_dim, output_dim)
    output_dim = 1

    key = jax.random.PRNGKey(0)
    kx, kw, kb = jax.random.split(key, 3)
    x = jax.random.normal(kx, (n, input_dim), dtype=jnp.float32)
    w = jax.random.normal(kw, (output_dim, input_dim), dtype=jnp.float32) * 0.1
    b = jax.random.normal(kb, (output_dim,), dtype=jnp.float32) * 0.1

    out = jax.block_until_ready(linear_forward(x, w, b))
    ref = x @ w.T + b
    assert out.shape == (n, output_dim)
    assert jnp.allclose(out, ref, atol=1e-5, rtol=1e-5)

    # Exercise the general tiled-matmul path (K needs zero-pad, ragged N).
    kx2, kw2, kb2 = jax.random.split(jax.random.PRNGKey(1), 3)
    x2 = jax.random.normal(kx2, (16, 32), dtype=jnp.float32)
    w2 = jax.random.normal(kw2, (8, 32), dtype=jnp.float32) * 0.1
    b2 = jax.random.normal(kb2, (8,), dtype=jnp.float32) * 0.1
    out2 = jax.block_until_ready(linear_forward(x2, w2, b2))
    assert jnp.allclose(out2, x2 @ w2.T + b2, atol=1e-4, rtol=1e-4)

    # Ragged M (50 not a multiple of 8) and ragged N: boundary-masked blocks,
    # no materialized M/N zero-padded copies of the inputs.
    kx3, kw3, kb3 = jax.random.split(jax.random.PRNGKey(2), 3)
    x3 = jax.random.normal(kx3, (50, 20), dtype=jnp.float32)
    w3 = jax.random.normal(kw3, (3, 20), dtype=jnp.float32) * 0.1
    b3 = jax.random.normal(kb3, (3,), dtype=jnp.float32) * 0.1
    out3 = jax.block_until_ready(linear_forward(x3, w3, b3))
    assert out3.shape == (50, 3)
    assert jnp.allclose(out3, x3 @ w3.T + b3, atol=1e-4, rtol=1e-4)

    print("KERNEL_OK")
</pallas_src>

<mosaic_0001>
module attributes {stable_mosaic.version = 11 : i64} {
  func.func @_linear_scalar_kernel(%arg0: memref<1x128xf32, #tpu.memory_space<vmem>>, %arg1: memref<1x2xf32, #tpu.memory_space<smem>>, %arg2: memref<1x128xf32, #tpu.memory_space<vmem>>) attributes {dimension_semantics = [], scalar_prefetch = 0 : i64, scratch_operands = 0 : i64, tpu.core_type = #tpu.core_type<tc>} {
    %c0 = arith.constant 0 : index
    %c0_0 = arith.constant 0 : index
    %0 = memref.load %arg1[%c0, %c0_0] : memref<1x2xf32, #tpu.memory_space<smem>>
    %c0_1 = arith.constant 0 : index
    %c1 = arith.constant 1 : index
    %1 = memref.load %arg1[%c0_1, %c1] : memref<1x2xf32, #tpu.memory_space<smem>>
    %c0_2 = arith.constant 0 : index
    %c0_3 = arith.constant 0 : index
    %2 = vector.load %arg0[%c0_2, %c0_3] : memref<1x128xf32, #tpu.memory_space<vmem>>, vector<1x128xf32>
    %3 = vector.broadcast %0 : f32 to vector<1x128xf32>
    %4 = arith.mulf %2, %3 : vector<1x128xf32>
    %5 = vector.broadcast %1 : f32 to vector<1x128xf32>
    %6 = arith.addf %4, %5 : vector<1x128xf32>
    %c0_4 = arith.constant 0 : index
    %c0_5 = arith.constant 0 : index
    %7 = vector.load %arg2[%c0_4, %c0_5] : memref<1x128xf32, #tpu.memory_space<vmem>>, vector<1x128xf32>
    tpu.vector_store %arg2[%c0_4, %c0_5], %6 {strides = array<i32>} : memref<1x128xf32, #tpu.memory_space<vmem>>, vector<1x128xf32>,
    return
  }
}

</mosaic_0001>

<llo_original>
// kernel: linear_forward.1
$region0: #{linear_forward.1}
  #allocation0 [shape = 'u32[]', space=smem, size = 0x4, offset = 0x4, fixed_abs, tag = 'smem constant byte address 0x4 - core index']
  #allocation1 [shape = 'u32[72,128]{1,0:T(1,128)}', space=vmem, size = 0x9000, scoped, tag = 'internal scratch']
  %s0 = inlined_call_operand.vmem [shape: f32[1,128], index: 0, kind: input, shape index: {}]
  %s1 = inlined_call_operand.vmem [shape: f32[1,2], index: 1, kind: input, shape index: {}]
  %s2 = inlined_call_operand.vmem [shape: f32[1,128], index: 2, kind: output, shape index: {}]
  %s3 = sld [smem:[#allocation0]]
  $region22: #{linear_forward.1} parent=0
    _
  %s5 = ssub.s32 1, %s3
  %s6 = scalar_select 0, %s5, %s3
  $region1: #{linear_forward.1} parent=0
    #allocation2 [shape = 'u8[512]{0}', space=smem, size = 0x200, scoped, tag = 'input window, operand 1, single buffered']
    #allocation3 [shape = 's32[1]{0}', space=sflag, size = 0x4, scoped, tag = 'scoped memory for linear_forward.1']
    %7 = vsyncpa [#allocation3], 0
    // Predicated region
    $region2: #{linear_forward.1} parent=1 // pred_check
      _
    $region3: #{linear_forward.1} parent=1 // pred_check_branch
      %9 = sbr.rel (0) target = $region5
    $region4: #{linear_forward.1} parent=1 // pred_region
      _
    $region5: #{linear_forward.1} parent=1 // pred_fallthru
      _
    // Predicated region
    $region6: #{linear_forward.1} parent=1 // pred_check
      _
    $region7: #{linear_forward.1} parent=1 // pred_check_branch
      %11 = sbr.rel (0) target = $region9
    $region8: #{linear_forward.1} parent=1 // pred_region
      %13 = vsyncadd [#allocation3], 0
      %s15 = sshll.u32 %s1, 4
      %s16 = int_to_ptr.vmem [resolvable:$true] %s15
      %18 = dma.vmem_to_smem %s16, 16, [#allocation2], [#allocation3]
    $region9: #{linear_forward.1} parent=1 // pred_fallthru
      _
    // Predicated region
    $region10: #{linear_forward.1} parent=1 // pred_check
      _
    $region11: #{linear_forward.1} parent=1 // pred_check_branch
      %20 = sbr.rel (0) target = $region13
    $region12: #{linear_forward.1} parent=1 // pred_region
      %22 = dma.done [#allocation3], 16
    $region13: #{linear_forward.1} parent=1 // pred_fallthru
      _
    %23 = sfence
    %s24 = sld [smem:[#allocation2]]
    %s25 = sld [smem:[#allocation2 + $0x1]]
    %v26 = vld [vmem:[%s0] sm:$0x1]
    %v27 = vstv %s24
    %v28 = vmul.f32 %v26, %v27
    %v29 = vstv %s25
    %v30 = vadd.f32 %v28, %v29
    %31 = vst [vmem:[%s2] sm:$0x1] %v30
    // Predicated region
    $region14: #{linear_forward.1} parent=1 // pred_check
      _
    $region15: #{linear_forward.1} parent=1 // pred_check_branch
      %33 = sbr.rel (0) target = $region17
    $region16: #{linear_forward.1} parent=1 // pred_region
      _
    $region17: #{linear_forward.1} parent=1 // pred_fallthru
      _
    // Predicated region
    $region18: #{linear_forward.1} parent=1 // pred_check
      _
    $region19: #{linear_forward.1} parent=1 // pred_check_branch
      %35 = sbr.rel (0) target = $region21
    $region20: #{linear_forward.1} parent=1 // pred_region
      _
    $region21: #{linear_forward.1} parent=1 // pred_fallthru
      _
    %36 = vsyncpa [#allocation3], 1

</llo_original>
